<compile_context>
chip_gen: v7x
topology: tpu7x:2x2x1
jax: 0.10.0
libtpu: 0.0.40
codegen_flags: <defaults>
</compile_context>

<pallas_src>
import functools

import jax
import jax.numpy as jnp
from jax import lax
from jax.experimental import pallas as pl
from jax.experimental.pallas import tpu as pltpu

LANES = 128
SUBLANES = 8
MAX_ROW_TILE = 8192      # (8192, 128) f32 = 4 MiB per input per pipeline buffer
STRIP_ROWS = 512         # in-kernel strip: bounds f32 intermediates to ~1 MiB
MIN_GRID_STEPS = 4       # keep >= 2 blocks per TensorCore on v7x megacore
SMOOTH = 1e-10


def _cdiv(a, b):
    return -(-a // b)


def _round_up(x, m):
    return _cdiv(x, m) * m


def _choose_row_tile(rows):
    """Pick the per-grid-step row block. Result is a multiple of 16 (or == rows)."""
    if rows < 2 * SUBLANES:
        return rows                                   # tiny input: single full-dim block
    if rows <= MIN_GRID_STEPS * STRIP_ROWS:
        t = max(16, _round_up(_cdiv(rows, MIN_GRID_STEPS), 16))
        return min(t, (rows // 16) * 16)
    t = _round_up(_cdiv(rows, MIN_GRID_STEPS), STRIP_ROWS)
    return min(MAX_ROW_TILE, t)


def _bce_partial_kernel(p_ref, t_ref, out_ref, *, strip_rows, needs_mask,
                        rem_rows, tail_cols):
    """One grid step: reduce a (row_tile, 128) block to an (8, 128) partial sum."""
    rt, lanes = p_ref.shape                   # static block shape
    n_strips = rt // strip_rows

    def strip_ce(off):
        # Cast AFTER the load: HBM traffic stays in the native (possibly bf16) dtype.
        p = p_ref[pl.ds(off, strip_rows), :].astype(jnp.float32)
        t = t_ref[pl.ds(off, strip_rows), :].astype(jnp.float32)
        return -(t * jnp.log(p + SMOOTH) + (1.0 - t) * jnp.log(1.0 - p + SMOOTH))

    def reduce_tile(x):
        # (strip, 128) -> (strip//8, 8, 128) -> (8, 128): VALU adds only, no XLU.
        return jnp.sum(x.reshape(strip_rows // SUBLANES, SUBLANES, lanes), axis=0)

    def valid_mask(off):
        # Block-relative indices compared against static last-block remainders
        # (no absolute flat index => no int32 overflow for huge element counts).
        row = off + lax.broadcasted_iota(jnp.int32, (strip_rows, lanes), 0)
        col = lax.broadcasted_iota(jnp.int32, (strip_rows, lanes), 1)
        return (row < rem_rows) | ((row == rem_rows) & (col < tail_cols))

    def block_sum(masked):
        def body(s, acc):
            off = s * strip_rows
            if not isinstance(off, int):
                off = pl.multiple_of(off, strip_rows)
            ce = strip_ce(off)
            if masked:
                # select-based masking: garbage / pad contributions are discarded.
                ce = jnp.where(valid_mask(off), ce, 0.0)
            return acc + reduce_tile(ce)

        zero = jnp.zeros((SUBLANES, lanes), jnp.float32)
        if n_strips == 1:
            return body(0, zero)
        return lax.fori_loop(0, n_strips, body, zero)

    if needs_mask:
        i = pl.program_id(0)
        last = pl.num_programs(0) - 1

        @pl.when(i == last)
        def _():
            out_ref[...] = block_sum(masked=True)

        @pl.when(i != last)
        def _():
            out_ref[...] = block_sum(masked=False)
    else:
        out_ref[...] = block_sum(masked=False)


@jax.jit
def segment_loss(y_pred, y_true):
    """Mean binary cross-entropy with smooth=1e-10, matching segmentLoss.forward."""
    n = y_pred.size

    p_flat = y_pred.reshape(-1)
    t_flat = y_true.reshape(-1)

    # Minimal tail pad: only to the next multiple of 128 (and to a full 8-row
    # group for sub-2K inputs). Lane-aligned inputs incur NO pad copy; padded
    # values are masked out in-kernel.
    n_pad = _round_up(n, LANES)
    rows = n_pad // LANES
    if rows < 2 * SUBLANES and rows % SUBLANES != 0:
        rows = _round_up(rows, SUBLANES)
        n_pad = rows * LANES
    if n_pad != n:
        p_flat = jnp.pad(p_flat, (0, n_pad - n))
        t_flat = jnp.pad(t_flat, (0, n_pad - n))

    p2 = p_flat.reshape(rows, LANES)
    t2 = t_flat.reshape(rows, LANES)

    row_tile = _choose_row_tile(rows)
    num_blocks = _cdiv(rows, row_tile)
    needs_mask = (num_blocks * row_tile * LANES) != n

    if row_tile > STRIP_ROWS and row_tile % STRIP_ROWS == 0:
        strip_rows = STRIP_ROWS
    else:
        strip_rows = row_tile

    full_rows = n // LANES                                # fully-valid rows overall
    rem_rows = full_rows - (num_blocks - 1) * row_tile    # valid full rows in last block
    tail_cols = n % LANES                                 # valid lanes in the partial row

    kernel = functools.partial(
        _bce_partial_kernel,
        strip_rows=strip_rows,
        needs_mask=needs_mask,
        rem_rows=rem_rows,
        tail_cols=tail_cols,
    )

    in_spec = pl.BlockSpec((row_tile, LANES), lambda i: (i, 0))
    out_spec = pl.BlockSpec((SUBLANES, LANES), lambda i: (i, 0))

    out_bytes = num_blocks * SUBLANES * LANES * 4
    in_bytes = n_pad * (p2.dtype.itemsize + t2.dtype.itemsize)
    cost = pl.CostEstimate(flops=8 * n, transcendentals=2 * n,
                           bytes_accessed=in_bytes + out_bytes)

    partials = pl.pallas_call(
        kernel,
        out_shape=jax.ShapeDtypeStruct((num_blocks * SUBLANES, LANES), jnp.float32),
        grid_spec=pltpu.PrefetchScalarGridSpec(
            num_scalar_prefetch=0,
            grid=(num_blocks,),
            in_specs=[in_spec, in_spec],
            out_specs=out_spec,
        ),
        compiler_params=pltpu.CompilerParams(
            dimension_semantics=("parallel",),   # independent blocks -> both TCs on v7x
            # Worst case: 2 inputs x 2 pipeline buffers x 4 MiB = 16 MiB + ~2 MiB temps.
            # Raises v5e's 16 MiB default scoped limit; well inside v7x's 64 MiB VMEM.
            vmem_limit_bytes=32 * 1024 * 1024,
        ),
        cost_estimate=cost,
    )(p2, t2)

    # Tiny final collapse + mean in plain JAX.
    return jnp.sum(partials) / jnp.float32(n)


def _reference(y_pred, y_true):
    smooth = 1e-10
    y_pred = y_pred.astype(jnp.float32)
    y_true = y_true.astype(jnp.float32)
    ce = -(y_true * jnp.log(y_pred + smooth)
           + (1.0 - y_true) * jnp.log(1.0 - y_pred + smooth))
    return jnp.mean(ce)


if __name__ == "__main__":
    key = jax.random.PRNGKey(0)
    k1, k2, k3, k4 = jax.random.split(key, 4)

    # Case 1: segmentation-head-like shape (batch, channels, H, W), lane-aligned.
    shape1 = (2, 4, 16, 16)
    y_pred1 = jax.nn.sigmoid(jax.random.normal(k1, shape1, dtype=jnp.float32))
    y_true1 = (jax.random.uniform(k2, shape1) > 0.5).astype(jnp.float32)
    out1 = jax.block_until_ready(segment_loss(y_pred1, y_true1))
    ref1 = _reference(y_pred1, y_true1)
    assert jnp.allclose(out1, ref1, rtol=1e-5, atol=1e-6), (out1, ref1)

    # Case 2: ragged shape -> exercises the minimal pad, multi-block grid and tail mask.
    shape2 = (2, 3, 37, 53)
    y_pred2 = jax.nn.sigmoid(jax.random.normal(k3, shape2, dtype=jnp.float32))
    y_true2 = (jax.random.uniform(k4, shape2) > 0.5).astype(jnp.float32)
    out2 = jax.block_until_ready(segment_loss(y_pred2, y_true2))
    ref2 = _reference(y_pred2, y_true2)
    assert jnp.allclose(out2, ref2, rtol=1e-5, atol=1e-6), (out2, ref2)

    print("KERNEL_OK")
</pallas_src>

<mosaic_0001>
module attributes {stable_mosaic.version = 11 : i64} {
  func.func @_bce_partial_kernel(%arg0: i32, %arg1: memref<16x128xf32, #tpu.memory_space<vmem>>, %arg2: memref<16x128xf32, #tpu.memory_space<vmem>>, %arg3: memref<8x128xf32, #tpu.memory_space<vmem>>) attributes {dimension_semantics = [#tpu.dimension_semantics<parallel>], iteration_bounds = array<i64: 1>, scalar_prefetch = 0 : i64, scratch_operands = 0 : i64, tpu.core_type = #tpu.core_type<tc>, window_params = [{transform_indices = @transform_0, window_bounds = array<i64: 16, 128>}, {transform_indices = @transform_1, window_bounds = array<i64: 16, 128>}, {transform_indices = @transform_2, window_bounds = array<i64: 8, 128>}]} {
    %cst = arith.constant 0.000000e+00 : f32
    %0 = vector.broadcast %cst : f32 to vector<8x128xf32>
    %c0 = arith.constant 0 : index
    %c0_0 = arith.constant 0 : index
    %1 = vector.load %arg1[%c0, %c0_0] : memref<16x128xf32, #tpu.memory_space<vmem>>, vector<16x128xf32>
    %c0_1 = arith.constant 0 : index
    %c0_2 = arith.constant 0 : index
    %2 = vector.load %arg2[%c0_1, %c0_2] : memref<16x128xf32, #tpu.memory_space<vmem>>, vector<16x128xf32>
    %cst_3 = arith.constant 1.000000e-10 : f32
    %3 = vector.broadcast %cst_3 : f32 to vector<16x128xf32>
    %4 = arith.addf %1, %3 : vector<16x128xf32>
    %5 = math.log %4 : vector<16x128xf32>
    %6 = arith.mulf %2, %5 : vector<16x128xf32>
    %cst_4 = arith.constant 1.000000e+00 : f32
    %7 = vector.broadcast %cst_4 : f32 to vector<16x128xf32>
    %8 = arith.subf %7, %2 : vector<16x128xf32>
    %cst_5 = arith.constant 1.000000e+00 : f32
    %9 = vector.broadcast %cst_5 : f32 to vector<16x128xf32>
    %10 = arith.subf %9, %1 : vector<16x128xf32>
    %cst_6 = arith.constant 1.000000e-10 : f32
    %11 = vector.broadcast %cst_6 : f32 to vector<16x128xf32>
    %12 = arith.addf %10, %11 : vector<16x128xf32>
    %13 = math.log %12 : vector<16x128xf32>
    %14 = arith.mulf %8, %13 : vector<16x128xf32>
    %15 = arith.addf %6, %14 : vector<16x128xf32>
    %cst_7 = arith.constant 0.000000e+00 : f32
    %16 = vector.broadcast %cst_7 : f32 to vector<16x128xf32>
    %17 = arith.subf %16, %15 : vector<16x128xf32>
    %18 = vector.shape_cast %17 : vector<16x128xf32> to vector<2x8x128xf32>
    %cst_8 = arith.constant dense<0.000000e+00> : vector<8x128xf32>
    %19 = vector.multi_reduction <add>, %18, %cst_8 [0] : vector<2x8x128xf32> to vector<8x128xf32>
    %20 = arith.addf %0, %19 : vector<8x128xf32>
    %c0_9 = arith.constant 0 : index
    %c0_10 = arith.constant 0 : index
    %21 = vector.load %arg3[%c0_9, %c0_10] : memref<8x128xf32, #tpu.memory_space<vmem>>, vector<8x128xf32>
    tpu.vector_store %arg3[%c0_9, %c0_10], %20 {strides = array<i32>} : memref<8x128xf32, #tpu.memory_space<vmem>>, vector<8x128xf32>,
    return
  }
  func.func @transform_0(%arg0: i32) -> (i32, i32) {
    %c0_i32 = arith.constant 0 : i32
    %c0_i32_0 = arith.constant 0 : i32
    return %arg0, %c0_i32 : i32, i32
  }
  func.func @transform_1(%arg0: i32) -> (i32, i32) {
    %c0_i32 = arith.constant 0 : i32
    %c0_i32_0 = arith.constant 0 : i32
    return %arg0, %c0_i32 : i32, i32
  }
  func.func @transform_2(%arg0: i32) -> (i32, i32) {
    %c0_i32 = arith.constant 0 : i32
    %c0_i32_0 = arith.constant 0 : i32
    return %arg0, %c0_i32 : i32, i32
  }
}

</mosaic_0001>

<llo_original>
// kernel: segment_loss.1
$region0: #{segment_loss.1}
  #allocation0 [shape = 'u32[]', space=smem, size = 0x4, offset = 0x4, fixed_abs, tag = 'smem constant byte address 0x4 - core index']
  #allocation1 [shape = 'u32[144,128]{1,0:T(1,128)}', space=vmem, size = 0x12000, scoped, tag = 'internal scratch']
  %s0 = inlined_call_operand.vmem [shape: f32[16,128], index: 0, kind: input, shape index: {}]
  %s1 = inlined_call_operand.vmem [shape: f32[16,128], index: 1, kind: input, shape index: {}]
  %s2 = inlined_call_operand.vmem [shape: f32[8,128], index: 2, kind: output, shape index: {}]
  %s3 = sld [smem:[#allocation0]]
  $region18: #{segment_loss.1} parent=0
    _
  %s5 = ssub.s32 1, %s3
  %s6 = scalar_select 0, %s5, %s3
  // Predicated region
  $region2: #{segment_loss.1} parent=0 // pred_check
    _
  $region3: #{segment_loss.1} parent=0 // pred_check_branch
    %8 = sbr.rel (0) target = $region5
  $region4: #{segment_loss.1} parent=0 // pred_region
    _
  $region5: #{segment_loss.1} parent=0 // pred_fallthru
    _
  // Predicated region
  $region6: #{segment_loss.1} parent=0 // pred_check
    _
  $region7: #{segment_loss.1} parent=0 // pred_check_branch
    %10 = sbr.rel (0) target = $region9
  $region8: #{segment_loss.1} parent=0 // pred_region
    _
  $region9: #{segment_loss.1} parent=0 // pred_fallthru
    _
  %v11 = vld [vmem:[%s0] sm:$0xff]
  %v12 = vld [vmem:[%s0 + $0x8] sm:$0xff]
  %v13 = vld [vmem:[%s1] sm:$0xff]
  %v14 = vld [vmem:[%s1 + $0x8] sm:$0xff]
  %v15 = vadd.f32 %v11, 1e-10
  %v16 = vadd.f32 %v12, 1e-10
  %v17 = vlog2.pop %v15
  %v18 = vmul.f32 %v17, 0.6931472
  %v19 = vlog2.pop %v16
  %v20 = vmul.f32 %v19, 0.6931472
  %v21 = vmul.f32 %v13, %v18
  %v22 = vmul.f32 %v14, %v20
  %v23 = vsub.f32 1.0, %v13
  %v24 = vsub.f32 1.0, %v14
  %v25 = vsub.f32 1.0, %v11
  %v26 = vsub.f32 1.0, %v12
  %v27 = vadd.f32 %v25, 1e-10
  %v28 = vadd.f32 %v26, 1e-10
  %v29 = vlog2.pop %v27
  %v30 = vmul.f32 %v29, 0.6931472
  %v31 = vlog2.pop %v28
  %v32 = vmul.f32 %v31, 0.6931472
  %v33 = vmul.f32 %v23, %v30
  %v34 = vmul.f32 %v24, %v32
  %v35 = vadd.f32 %v21, %v33
  %v36 = vadd.f32 %v22, %v34
  %v37 = vsub.f32 0.0, %v35
  %v38 = vsub.f32 0.0, %v36
  %v39 = vadd.f32 %v37, %v38
  %v40 = vadd.f32 %v39, 0.0
  %41 = vst [vmem:[%s2] sm:$0xff] %v40
  // Predicated region
  $region10: #{segment_loss.1} parent=0 // pred_check
    _
  $region11: #{segment_loss.1} parent=0 // pred_check_branch
    %43 = sbr.rel (0) target = $region13
  $region12: #{segment_loss.1} parent=0 // pred_region
    _
  $region13: #{segment_loss.1} parent=0 // pred_fallthru
    _
  // Predicated region
  $region14: #{segment_loss.1} parent=0 // pred_check
    _
  $region15: #{segment_loss.1} parent=0 // pred_check_branch
    %45 = sbr.rel (0) target = $region17
  $region16: #{segment_loss.1} parent=0 // pred_region
    _
  $region17: #{segment_loss.1} parent=0 // pred_fallthru
    _

</llo_original>
